<compile_context>
chip_gen: v6e
topology: v6e:2x2x1
jax: 0.10.0
libtpu: 0.0.40
codegen_flags: <defaults>
</compile_context>

<pallas_src>
import functools
import math

import jax
import jax.numpy as jnp
from jax.experimental import pallas as pl
from jax.experimental.pallas import tpu as pltpu


def _round_up(x: int, m: int) -> int:
    return (x + m - 1) // m * m


def _patch_embed_kernel(x_ref, w_ref, b_ref, o_ref, acc_ref):
    # x_ref: (tm, tk) bf16 patch rows, w_ref: (tk, Dp) bf16,
    # b_ref: (1, Dp) f32, o_ref: (tm, Dp) f32, acc_ref: (tm, Dp) f32 scratch.
    k = pl.program_id(1)

    @pl.when(k == 0)
    def _():
        acc_ref[...] = jnp.zeros_like(acc_ref)

    acc_ref[...] += jnp.dot(
        x_ref[...], w_ref[...], preferred_element_type=jnp.float32)

    @pl.when(k == pl.num_programs(1) - 1)
    def _():
        o_ref[...] = (acc_ref[...] + b_ref[...]).astype(o_ref.dtype)


@functools.partial(jax.jit, static_argnames=("patch_size", "tm", "compute_dtype"))
def feat_embed_forward(x, weight, bias, patch_size, *, tm=512,
                       compute_dtype=jnp.bfloat16):
    """FeatEmbed.forward.

    Args:
      x:      (B, C, H, W) float32, NCHW (PyTorch convention).
      weight: (D, C, ph, pw) float32 (PyTorch Conv2d weight layout).
      bias:   (D,) float32.
      patch_size: (ph, pw).
      tm:     M-tile (rows of patches per grid step); multiple of 8.
      compute_dtype: MXU operand dtype (bf16 recommended; accumulation is f32).

    Returns:
      (B, N, D) float32, N = (H // ph) * (W // pw).
      Matches `rearrange(conv(x).flatten(2), 'b d n -> b n d')`.
    """
    B, C, H, W = x.shape
    D = weight.shape[0]
    ph, pw = patch_size
    assert H % ph == 0 and W % pw == 0, "H*W must be divisible by patch size"
    nh, nw = H // ph, W // pw
    N = nh * nw
    K = C * ph * pw
    M = B * N

    # ---- XLA-side prep (fused under jit): cast early so the transpose moves
    # half the bytes, then form (M, K) patch rows with Conv2d-compatible
    # (c, kh, kw) ordering.
    xq = x.astype(compute_dtype)
    patches = xq.reshape(B, C, nh, ph, nw, pw)
    patches = patches.transpose(0, 2, 4, 1, 3, 5)          # (B, nh, nw, C, ph, pw)
    patches = patches.reshape(M, K)

    w_mat = weight.reshape(D, K).T.astype(compute_dtype)   # (K, D)

    # ---- Pad to TPU-friendly sizes (zeros are inert under dot).
    tm_eff = min(tm, _round_up(M, 8))
    tm_eff = _round_up(tm_eff, 8)
    Mp = _round_up(M, tm_eff)
    Kp = _round_up(K, 128)
    Dp = _round_up(D, 128)

    # K tile: multiple of 128 that divides Kp (Kp is always a multiple of 128).
    if Kp % 512 == 0 and Kp >= 512:
        tk = 512
    elif Kp % 256 == 0 and Kp >= 256:
        tk = 256
    else:
        tk = 128
    tk = min(tk, Kp)

    if Mp > M or Kp > K:
        patches = jnp.pad(patches, ((0, Mp - M), (0, Kp - K)))
    if Kp > K or Dp > D:
        w_mat = jnp.pad(w_mat, ((0, Kp - K), (0, Dp - D)))
    b_mat = jnp.pad(bias, (0, Dp - D)).reshape(1, Dp).astype(jnp.float32)

    grid = (Mp // tm_eff, Kp // tk)

    out_p = pl.pallas_call(
        _patch_embed_kernel,
        out_shape=jax.ShapeDtypeStruct((Mp, Dp), jnp.float32),
        grid_spec=pltpu.PrefetchScalarGridSpec(
            num_scalar_prefetch=0,
            grid=grid,
            in_specs=[
                pl.BlockSpec((tm_eff, tk), lambda i, k: (i, k)),   # x tiles stream
                pl.BlockSpec((tk, Dp), lambda i, k: (k, 0)),       # weight panel
                pl.BlockSpec((1, Dp), lambda i, k: (0, 0)),        # bias resident
            ],
            out_specs=pl.BlockSpec((tm_eff, Dp), lambda i, k: (i, 0)),
            scratch_shapes=[pltpu.VMEM((tm_eff, Dp), jnp.float32)],
        ),
        compiler_params=pltpu.CompilerParams(
            dimension_semantics=("parallel", "arbitrary"),
            vmem_limit_bytes=32 * 1024 * 1024,
        ),
    )(patches, w_mat, b_mat)

    out = out_p[:M, :D].reshape(B, N, D)
    return out.astype(x.dtype)


def init_feat_embed_params(key, in_channels, embed_dims, patch_size):
    """Deterministic kaiming_init(mode='fan_in', nonlinearity='linear')."""
    ph, pw = patch_size
    fan_in = in_channels * ph * pw
    gain = 1.0  # linear nonlinearity
    std = gain / math.sqrt(fan_in)
    kw, _ = jax.random.split(key)
    weight = std * jax.random.normal(
        kw, (embed_dims, in_channels, ph, pw), dtype=jnp.float32)
    bias = jnp.zeros((embed_dims,), dtype=jnp.float32)  # kaiming_init zeroes bias
    return weight, bias


if __name__ == "__main__":
    # Small shapes consistent with the module: img 16x16, patch 4, C=4, D=32.
    B, C, H, W = 2, 4, 16, 16
    patch = (4, 4)
    embed_dims = 32

    key = jax.random.PRNGKey(0)
    kx, kp = jax.random.split(key)
    x = jax.random.normal(kx, (B, C, H, W), dtype=jnp.float32)
    weight, bias = init_feat_embed_params(kp, C, embed_dims, patch)

    out = feat_embed_forward(x, weight, bias, patch)
    out = jax.block_until_ready(out)

    # Reference: conv via lax on bf16-quantized operands (the kernel computes
    # the matmul with bf16 MXU operands and f32 accumulation), f32 math.
    xq = x.astype(jnp.bfloat16).astype(jnp.float32)
    wq = weight.astype(jnp.bfloat16).astype(jnp.float32)
    ref = jax.lax.conv_general_dilated(
        xq, wq, window_strides=patch, padding="VALID",
        dimension_numbers=("NCHW", "OIHW", "NCHW"),
        precision=jax.lax.Precision.HIGHEST)
    ref = ref + bias[None, :, None, None]
    ref = ref.reshape(B, embed_dims, -1).transpose(0, 2, 1)  # b d n -> b n d

    assert out.shape == (B, (H // patch[0]) * (W // patch[1]), embed_dims)
    assert jnp.allclose(out, ref, atol=1e-3, rtol=1e-3), (
        float(jnp.max(jnp.abs(out - ref))))

    print("KERNEL_OK")
</pallas_src>

<mosaic_0001>
module attributes {stable_mosaic.version = 11 : i64} {
  func.func @_patch_embed_kernel(%arg0: i32, %arg1: i32, %arg2: memref<32x128xbf16, #tpu.memory_space<vmem>>, %arg3: memref<128x128xbf16, #tpu.memory_space<vmem>>, %arg4: memref<1x128xf32, #tpu.memory_space<vmem>>, %arg5: memref<32x128xf32, #tpu.memory_space<vmem>>, %arg6: memref<32x128xf32, #tpu.memory_space<vmem>>) attributes {dimension_semantics = [#tpu.dimension_semantics<parallel>, #tpu.dimension_semantics<arbitrary>], iteration_bounds = array<i64: 1, 1>, scalar_prefetch = 0 : i64, scratch_operands = 1 : i64, tpu.core_type = #tpu.core_type<tc>, window_params = [{transform_indices = @transform_0, window_bounds = array<i64: 32, 128>}, {transform_indices = @transform_1, window_bounds = array<i64: 128, 128>}, {pipeline_mode = #tpu.pipeline_mode<synchronous>, transform_indices = @transform_2, window_bounds = array<i64: 1, 128>}, {transform_indices = @transform_3, window_bounds = array<i64: 32, 128>}]} {
    %c0_i32 = arith.constant 0 : i32
    %0 = arith.cmpi eq, %arg1, %c0_i32 : i32
    %1 = arith.extui %0 : i1 to i32
    %c0_i32_0 = arith.constant 0 : i32
    %2 = arith.cmpi ne, %1, %c0_i32_0 : i32
    scf.if %2 {
      %cst_10 = arith.constant 0.000000e+00 : f32
      %12 = vector.broadcast %cst_10 : f32 to vector<32x128xf32>
      %c0_11 = arith.constant 0 : index
      %c0_12 = arith.constant 0 : index
      %13 = vector.load %arg6[%c0_11, %c0_12] : memref<32x128xf32, #tpu.memory_space<vmem>>, vector<32x128xf32>
      tpu.vector_store %arg6[%c0_11, %c0_12], %12 {strides = array<i32>} : memref<32x128xf32, #tpu.memory_space<vmem>>, vector<32x128xf32>,
    } else {
    }
    %c0 = arith.constant 0 : index
    %c0_1 = arith.constant 0 : index
    %3 = vector.load %arg6[%c0, %c0_1] : memref<32x128xf32, #tpu.memory_space<vmem>>, vector<32x128xf32>
    %c0_2 = arith.constant 0 : index
    %c0_3 = arith.constant 0 : index
    %4 = vector.load %arg2[%c0_2, %c0_3] : memref<32x128xbf16, #tpu.memory_space<vmem>>, vector<32x128xbf16>
    %c0_4 = arith.constant 0 : index
    %c0_5 = arith.constant 0 : index
    %5 = vector.load %arg3[%c0_4, %c0_5] : memref<128x128xbf16, #tpu.memory_space<vmem>>, vector<128x128xbf16>
    %cst = arith.constant dense<0.000000e+00> : vector<32x128xf32>
    %6 = tpu.matmul %4, %5, %cst {dimension_numbers = #tpu.dot_dimension_numbers<[1], [0], [0], [1], [0, 0, 1, 1], [], []>} : vector<32x128xbf16>, vector<128x128xbf16>, vector<32x128xf32> -> vector<32x128xf32>
    %7 = arith.addf %3, %6 : vector<32x128xf32>
    %c0_6 = arith.constant 0 : index
    %c0_7 = arith.constant 0 : index
    %8 = vector.load %arg6[%c0_6, %c0_7] : memref<32x128xf32, #tpu.memory_space<vmem>>, vector<32x128xf32>
    tpu.vector_store %arg6[%c0_6, %c0_7], %7 {strides = array<i32>} : memref<32x128xf32, #tpu.memory_space<vmem>>, vector<32x128xf32>,
    %c0_i32_8 = arith.constant 0 : i32
    %9 = arith.cmpi eq, %arg1, %c0_i32_8 : i32
    %10 = arith.extui %9 : i1 to i32
    %c0_i32_9 = arith.constant 0 : i32
    %11 = arith.cmpi ne, %10, %c0_i32_9 : i32
    scf.if %11 {
      %c0_10 = arith.constant 0 : index
      %c0_11 = arith.constant 0 : index
      %12 = vector.load %arg6[%c0_10, %c0_11] : memref<32x128xf32, #tpu.memory_space<vmem>>, vector<32x128xf32>
      %c0_12 = arith.constant 0 : index
      %c0_13 = arith.constant 0 : index
      %13 = vector.load %arg4[%c0_12, %c0_13] : memref<1x128xf32, #tpu.memory_space<vmem>>, vector<1x128xf32>
      %14 = vector.broadcast %13 : vector<1x128xf32> to vector<32x128xf32>
      %15 = arith.addf %12, %14 : vector<32x128xf32>
      %c0_14 = arith.constant 0 : index
      %c0_15 = arith.constant 0 : index
      %16 = vector.load %arg5[%c0_14, %c0_15] : memref<32x128xf32, #tpu.memory_space<vmem>>, vector<32x128xf32>
      tpu.vector_store %arg5[%c0_14, %c0_15], %15 {strides = array<i32>} : memref<32x128xf32, #tpu.memory_space<vmem>>, vector<32x128xf32>,
    } else {
    }
    return
  }
  func.func @transform_0(%arg0: i32, %arg1: i32) -> (i32, i32) {
    %c0_i32 = arith.constant 0 : i32
    return %arg0, %arg1 : i32, i32
  }
  func.func @transform_1(%arg0: i32, %arg1: i32) -> (i32, i32) {
    %c0_i32 = arith.constant 0 : i32
    %c0_i32_0 = arith.constant 0 : i32
    return %arg1, %c0_i32 : i32, i32
  }
  func.func @transform_2(%arg0: i32, %arg1: i32) -> (i32, i32) {
    %c0_i32 = arith.constant 0 : i32
    %c0_i32_0 = arith.constant 0 : i32
    %c0_i32_1 = arith.constant 0 : i32
    return %c0_i32, %c0_i32_0 : i32, i32
  }
  func.func @transform_3(%arg0: i32, %arg1: i32) -> (i32, i32) {
    %c0_i32 = arith.constant 0 : i32
    %c0_i32_0 = arith.constant 0 : i32
    return %arg0, %c0_i32 : i32, i32
  }
}

</mosaic_0001>

<llo_original>
// kernel: feat_embed_forward.1
$region0: #{feat_embed_forward.1}
  #allocation0 [shape = 'u32[]', space=smem, size = 0x4, offset = 0x4, fixed_abs, tag = 'smem constant byte address 0x4 - core index']
  #allocation1 [shape = 'u32[144,128]{1,0:T(1,128)}', space=vmem, size = 0x12000, scoped, tag = 'internal scratch']
  #allocation2 [shape = 'f32[32,128]{1,0:T(8,128)}', space=vmem, size = 0x4000, scoped, tag = 'scratch operand']
  %s0 = inlined_call_operand.vmem [shape: bf16[32,128], index: 0, kind: input, shape index: {}]
  %s1 = inlined_call_operand.vmem [shape: bf16[128,128], index: 1, kind: input, shape index: {}]
  %s2 = inlined_call_operand.vmem [shape: f32[1,128], index: 2, kind: input, shape index: {}]
  %s3 = inlined_call_operand.hbm [shape: f32[32,128], index: 3, kind: output, shape index: {}]
  %s4 = sld [smem:[#allocation0]]
  $region30: #{feat_embed_forward.1} parent=0
    _
  %s6 = ssub.s32 1, %s4
  %s7 = scalar_select 0, %s6, %s4
  $region1: #{feat_embed_forward.1} parent=0
    #allocation3 [shape = 'u8[16384]{0}', space=vmem, size = 0x4000, scoped, tag = 'output window, operand 0, single buffered']
    #allocation4 [shape = 's32[1]{0}', space=sflag, size = 0x4, scoped, tag = 'scoped memory for feat_embed_forward.1']
    %8 = vsyncpa [#allocation4], 0
    // Predicated region
    $region2: #{feat_embed_forward.1} parent=1 // pred_check
      _
    $region3: #{feat_embed_forward.1} parent=1 // pred_check_branch
      %10 = sbr.rel (0) target = $region5
    $region4: #{feat_embed_forward.1} parent=1 // pred_region
      _
    $region5: #{feat_embed_forward.1} parent=1 // pred_fallthru
      _
    // Predicated region
    $region6: #{feat_embed_forward.1} parent=1 // pred_check
      _
    $region7: #{feat_embed_forward.1} parent=1 // pred_check_branch
      %12 = sbr.rel (0) target = $region9
    $region8: #{feat_embed_forward.1} parent=1 // pred_region
      _
    $region9: #{feat_embed_forward.1} parent=1 // pred_fallthru
      _
    // Predicated region
    $region10: #{feat_embed_forward.1} parent=1 // pred_check
      _
    $region11: #{feat_embed_forward.1} parent=1 // pred_check_branch
      %14 = sbr.rel (0) target = $region13
    $region12: #{feat_embed_forward.1} parent=1 // pred_region
      _
    $region13: #{feat_embed_forward.1} parent=1 // pred_fallthru
      _
    %p16 = scmp.eq.s32.totalorder 0, 0
    // Predicated region
    $region14: #{feat_embed_forward.1} parent=1 // pred_check
      %p17 = pneg %p16
    $region15: #{feat_embed_forward.1} parent=1 // pred_check_branch
      %19 = sbr.rel (%p17) target = $region17
    $region16: #{feat_embed_forward.1} parent=1 // pred_region
      %20 = vst [vmem:[#allocation2] sm:$0xff] 0.0
      %21 = vst [vmem:[#allocation2 + $0x8] sm:$0xff] 0.0
      %22 = vst [vmem:[#allocation2 + $0x10] sm:$0xff] 0.0
      %23 = vst [vmem:[#allocation2 + $0x18] sm:$0xff] 0.0
    $region17: #{feat_embed_forward.1} parent=1 // pred_fallthru
      _
    %v24 = vld [vmem:[#allocation2] sm:$0xff]
    %v25 = vld [vmem:[#allocation2 + $0x8] sm:$0xff]
    %v26 = vld [vmem:[#allocation2 + $0x10] sm:$0xff]
    %v27 = vld [vmem:[#allocation2 + $0x18] sm:$0xff]
    %v28 = vld [vmem:[%s0] sm:$0xf]
    %v29 = vld [vmem:[%s0 + $0x4] sm:$0xf]
    %v30 = vld [vmem:[%s0 + $0x8] sm:$0xf]
    %v31 = vld [vmem:[%s0 + $0xc] sm:$0xf]
    %v32 = vld [vmem:[%s1] sm:$0xf]
    %v33 = vld [vmem:[%s1 + $0x4] sm:$0xf]
    %v34 = vld [vmem:[%s1 + $0x8] sm:$0xf]
    %v35 = vld [vmem:[%s1 + $0xc] sm:$0xf]
    %v36 = vld [vmem:[%s1 + $0x10] sm:$0xf]
    %v37 = vld [vmem:[%s1 + $0x14] sm:$0xf]
    %v38 = vld [vmem:[%s1 + $0x18] sm:$0xf]
    %v39 = vld [vmem:[%s1 + $0x1c] sm:$0xf]
    %v40 = vld [vmem:[%s1 + $0x20] sm:$0xf]
    %v41 = vld [vmem:[%s1 + $0x24] sm:$0xf]
    %v42 = vld [vmem:[%s1 + $0x28] sm:$0xf]
    %v43 = vld [vmem:[%s1 + $0x2c] sm:$0xf]
    %v44 = vld [vmem:[%s1 + $0x30] sm:$0xf]
    %v45 = vld [vmem:[%s1 + $0x34] sm:$0xf]
    %v46 = vld [vmem:[%s1 + $0x38] sm:$0xf]
    %v47 = vld [vmem:[%s1 + $0x3c] sm:$0xf]
    %v52 = vunpack.c.l.b16 %v28
    %v53 = vunpack.c.l.b16 %v29
    %v54 = vunpack.c.l.b16 %v30
    %v55 = vunpack.c.l.b16 %v31
    %v56 = vpack.c.b16 %v53, %v52
    %v57 = vpack.c.b16 %v55, %v54
    %v76 = vunpack.c.l.b16 %v32
    %v77 = vunpack.c.l.b16 %v33
    %v78 = vunpack.c.l.b16 %v34
    %v79 = vunpack.c.l.b16 %v35
    %v80 = vunpack.c.l.b16 %v36
    %v81 = vunpack.c.l.b16 %v37
    %v82 = vunpack.c.l.b16 %v38
    %v83 = vunpack.c.l.b16 %v39
    %v84 = vunpack.c.l.b16 %v40
    %v85 = vunpack.c.l.b16 %v41
    %v86 = vunpack.c.l.b16 %v42
    %v87 = vunpack.c.l.b16 %v43
    %v88 = vunpack.c.l.b16 %v44
    %v89 = vunpack.c.l.b16 %v45
    %v90 = vunpack.c.l.b16 %v46
    %v91 = vunpack.c.l.b16 %v47
    %v92 = vpack.c.b16 %v77, %v76
    %v93 = vpack.c.b16 %v79, %v78
    %v94 = vpack.c.b16 %v81, %v80
    %v95 = vpack.c.b16 %v83, %v82
    %v96 = vpack.c.b16 %v85, %v84
    %v97 = vpack.c.b16 %v87, %v86
    %v98 = vpack.c.b16 %v89, %v88
    %v99 = vpack.c.b16 %v91, %v90
    %108 = vmatprep.subr.bf16.mxu0 0
    %109 = vmatpush1.bf16.msra.mxu0 %v99
    %110 = vmatprep.subr.bf16.mxu0 0
    %111 = vmatpush1.bf16.msra.mxu0 %v98
    %112 = vmatprep.subr.bf16.mxu0 0
    %113 = vmatpush1.bf16.msra.mxu0 %v97
    %114 = vmatprep.subr.bf16.mxu0 0
    %115 = vmatpush1.bf16.msra.mxu0 %v96
    %116 = vmatprep.subr.bf16.mxu0 0
    %117 = vmatpush1.bf16.msra.mxu0 %v95
    %118 = vmatprep.subr.bf16.mxu0 0
    %119 = vmatpush1.bf16.msra.mxu0 %v94
    %120 = vmatprep.subr.bf16.mxu0 0
    %121 = vmatpush1.bf16.msra.mxu0 %v93
    %122 = vmatprep.subr.bf16.mxu0 0
    %123 = vmatpush1.bf16.msra.mxu0 %v92
    %124 = vmatprep.subr.bf16.mxu0 0
    %125 = vmatpush2.bf16.msra.mxu0 0
    %126 = vmatprep.subr.bf16.mxu0 0
    %127 = vmatpush2.bf16.msra.mxu0 0
    %128 = vmatprep.subr.bf16.mxu0 0
    %129 = vmatpush2.bf16.msra.mxu0 0
    %130 = vmatprep.subr.bf16.mxu0 0
    %131 = vmatpush2.bf16.msra.mxu0 0
    %132 = vmatprep.subr.bf16.mxu0 0
    %133 = vmatpush2.bf16.msra.mxu0 0
    %134 = vmatprep.subr.bf16.mxu0 0
    %135 = vmatpush2.bf16.msra.mxu0 0
    %136 = vmatprep.subr.bf16.mxu0 0
    %137 = vmatpush2.bf16.msra.mxu0 0
    %138 = vmatprep.subr.bf16.mxu0 0
    %139 = vmatpush2.bf16.msra.mxu0 0
    %140 = vmatprep.mubr.bf16.mxu0 0
    %141 = vmatmul.mubr.bf16.gmra.mxu0 %v56
    %v142 = vpop.f32.mrf.mxu0
    %v143 = vadd.f32 0.0, %v142
    %v144 = vpop.f32.mrf.mxu0
    %v145 = vpop.f32.mrf.mxu0
    %v146 = vadd.f32 0.0, %v145
    %v147 = vpop.f32.mrf.mxu0
    %148 = vmatprep.mubr.bf16.mxu0 0
    %149 = vmatmul.mubr.bf16.gmra.mxu0 %v57
    %v150 = vpop.f32.mrf.mxu0
    %v151 = vadd.f32 0.0, %v150
    %v152 = vpop.f32.mrf.mxu0
    %v153 = vpop.f32.mrf.mxu0
    %v154 = vadd.f32 0.0, %v153
    %v155 = vpop.f32.mrf.mxu0
    %156 = vdwg.mxu0
    %v157 = vadd.f32 %v24, %v143
    %v158 = vadd.f32 %v25, %v146
    %v159 = vadd.f32 %v26, %v151
    %v160 = vadd.f32 %v27, %v154
    %161 = vst [vmem:[#allocation2] sm:$0xff] %v157
    %162 = vst [vmem:[#allocation2 + $0x8] sm:$0xff] %v158
    %163 = vst [vmem:[#allocation2 + $0x10] sm:$0xff] %v159
    %164 = vst [vmem:[#allocation2 + $0x18] sm:$0xff] %v160
    // Predicated region
    $region18: #{feat_embed_forward.1} parent=1 // pred_check
      %p165 = pneg %p16
    $region19: #{feat_embed_forward.1} parent=1 // pred_check_branch
      %167 = sbr.rel (%p165) target = $region21
    $region20: #{feat_embed_forward.1} parent=1 // pred_region
      %v168 = vld [vmem:[#allocation2] sm:$0xff]
      %v169 = vld [vmem:[#allocation2 + $0x8] sm:$0xff]
      %v170 = vld [vmem:[#allocation2 + $0x10] sm:$0xff]
      %v171 = vld [vmem:[#allocation2 + $0x18] sm:$0xff]
      %v172 = vld [vmem:[%s2] sm:$0x1]
      %v174 = vlaneseq
      %v175 = vshrl.u32 %v174, 7
      %v176 = vsub.s32 0, %v175
      %v177 = vrot.slane %v172, %v176
      %v179 = vadd.f32 %v168, %v177
      %v180 = vadd.f32 %v169, %v177
      %v181 = vadd.f32 %v170, %v177
      %v182 = vadd.f32 %v171, %v177
      %183 = vst [vmem:[#allocation3] sm:$0xff] %v179
      %184 = vst [vmem:[#allocation3 + $0x8] sm:$0xff] %v180
      %185 = vst [vmem:[#allocation3 + $0x10] sm:$0xff] %v181
      %186 = vst [vmem:[#allocation3 + $0x18] sm:$0xff] %v182
    $region21: #{feat_embed_forward.1} parent=1 // pred_fallthru
      _
    // Predicated region
    $region22: #{feat_embed_forward.1} parent=1 // pred_check
      _
    $region23: #{feat_embed_forward.1} parent=1 // pred_check_branch
      %188 = sbr.rel (0) target = $region25
    $region24: #{feat_embed_forward.1} parent=1 // pred_region
      %s190 = ssub.s32 512, 512
      %191 = vsyncadd [#allocation4], %s190
      %s192 = sshll.u32 [#allocation3], 4
      %s193 = int_to_ptr.vmem [resolvable:$true] %s192
      %198 = dma.vmem_to_hbm [thread:$0]  %s193, 512, %s3, [#allocation4], 128, 128, 8
    $region25: #{feat_embed_forward.1} parent=1 // pred_fallthru
      _
    // Predicated region
    $region26: #{feat_embed_forward.1} parent=1 // pred_check
      _
    $region27: #{feat_embed_forward.1} parent=1 // pred_check_branch
      %200 = sbr.rel (0) target = $region29
    $region28: #{feat_embed_forward.1} parent=1 // pred_region
      %201 = dma.done [#allocation4], 512
    $region29: #{feat_embed_forward.1} parent=1 // pred_fallthru
      _
    %202 = vsyncpa [#allocation4], 1

</llo_original>
